<compile_context>
chip_gen: v7x
topology: tpu7x:2x2x1
jax: 0.10.0
libtpu: 0.0.40
codegen_flags: <defaults>
</compile_context>

<pallas_src>
import jax
import jax.numpy as jnp
from jax.experimental import pallas as pl
from jax.experimental.pallas import tpu as pltpu


def _round_up(x, m):
    return ((x + m - 1) // m) * m


def _mlp_kernel(x_ref, w1_ref, b1_ref, w2_ref, b2_ref, w3_ref, b3_ref, o_ref):
    """Fused 3-layer MLP on one feature-major batch tile.

    x_ref : (F,  bm) bf16     w1_ref: (H1, F)  bf16    b1_ref: (H1, 1) f32
    w2_ref: (H2, H1) bf16     b2_ref: (H2, 1)  f32
    w3_ref: (H2, 1)  f32      b3_ref: (1,  1)  f32
    o_ref : (1,  bm) f32
    """
    x = x_ref[...]

    # Layer 1: (H1, F) @ (F, bm) -> (H1, bm), bf16 MXU inputs, f32 accumulate.
    h1 = jnp.dot(w1_ref[...], x, preferred_element_type=jnp.float32)
    h1 = jnp.maximum(h1 + b1_ref[...], 0.0)

    # Layer 2: (H2, H1) @ (H1, bm) -> (H2, bm).
    h2 = jnp.dot(w2_ref[...], h1.astype(jnp.bfloat16),
                 preferred_element_type=jnp.float32)
    h2 = jnp.maximum(h2 + b2_ref[...], 0.0)

    # Layer 3 (10 -> 1): keep it off the MXU — VPU multiply + sublane reduce.
    out = jnp.sum(h2 * w3_ref[...], axis=0, keepdims=True) + b3_ref[...]
    o_ref[...] = out.astype(o_ref.dtype)


def _build_call(F, H1, H2, O, bm, grid_b, b_pad, single_buffer_weights):
    """Construct the pallas_call for given static sizes."""
    if single_buffer_weights:
        def const(shape):  # constant index map -> DMA'd once; single-buffered
            return pl.BlockSpec(shape, lambda i: (0, 0),
                                pipeline_mode=pl.Buffered(1))
    else:
        def const(shape):
            return pl.BlockSpec(shape, lambda i: (0, 0))

    return pl.pallas_call(
        _mlp_kernel,
        out_shape=jax.ShapeDtypeStruct((O, b_pad), jnp.float32),
        grid_spec=pltpu.PrefetchScalarGridSpec(
            num_scalar_prefetch=0,
            grid=(grid_b,),
            in_specs=[
                pl.BlockSpec((F, bm), lambda i: (0, i)),   # X tile (lane-dense)
                const((H1, F)),    # W1
                const((H1, 1)),    # b1
                const((H2, H1)),   # W2
                const((H2, 1)),    # b2
                const((H2, O)),    # W3 (f32, VPU path)
                const((O, 1)),     # b3
            ],
            out_specs=pl.BlockSpec((O, bm), lambda i: (0, i)),
        ),
        compiler_params=pltpu.CompilerParams(
            dimension_semantics=("parallel",),
            vmem_limit_bytes=32 * 1024 * 1024,  # explicit; safe on v5e/v6e/v7x
        ),
    )


def dummy_mlp_forward(X, Y, params, *, bm=1024):
    """Pallas implementation of DummyMLP.forward(X, Y).  Y is ignored."""
    del Y  # unused, kept for interface parity with the PyTorch module
    w1, b1, w2, b2, w3, b3 = params
    B, F = X.shape
    H1 = w1.shape[1]   # 50
    H2 = w2.shape[1]   # 10
    O = w3.shape[1]    # 1
    assert O == 1, "DummyMLP has a fixed scalar output head"

    # --- batch tiling: lane-aligned tiles, grid via cdiv + zero padding -----
    bm = max(128, _round_up(bm, 128))
    b_lanes = _round_up(B, 128)
    bm = min(bm, b_lanes)
    # v7x megacore: prefer >= 2 parallel grid steps when the batch allows it.
    if b_lanes >= 256 and pl.cdiv(b_lanes, bm) < 2:
        bm = _round_up(pl.cdiv(b_lanes, 2), 128)
    grid_b = pl.cdiv(B, bm)
    b_pad = grid_b * bm

    # --- layout plumbing: feature-major (batch on lanes) + bf16 matmul inputs
    xt = jnp.pad(X, ((0, b_pad - B), (0, 0))).T.astype(jnp.bfloat16)  # (F, b_pad)
    w1m = w1.T.astype(jnp.bfloat16)                   # (H1, F)
    w2m = w2.T.astype(jnp.bfloat16)                   # (H2, H1)
    w3m = w3.astype(jnp.float32)                      # (H2, O), VPU path
    b1m = b1.reshape(H1, 1).astype(jnp.float32)
    b2m = b2.reshape(H2, 1).astype(jnp.float32)
    b3m = b3.reshape(O, 1).astype(jnp.float32)

    args = (xt, w1m, b1m, w2m, b2m, w3m, b3m)
    try:
        out = _build_call(F, H1, H2, O, bm, grid_b, b_pad, True)(*args)
    except Exception:
        # pipeline_mode=pl.Buffered(1) not supported in this jax build; the
        # weights are tiny, so default double-buffering costs almost nothing.
        out = _build_call(F, H1, H2, O, bm, grid_b, b_pad, False)(*args)

    # (O, b_pad) -> drop padded batch columns, back to torch's (B, O) layout.
    return out[:, :B].T


def init_params(key, history_span, input_size):
    """Deterministic parameter init (uniform, like torch.nn.Linear's default
    range 1/sqrt(fan_in)).  Weights are stored (in, out)."""
    in_f = history_span * input_size
    dims = [(in_f, 50), (50, 10), (10, 1)]
    params = []
    for (fan_in, fan_out) in dims:
        key, kw, kb = jax.random.split(key, 3)
        bound = 1.0 / jnp.sqrt(fan_in)
        w = jax.random.uniform(kw, (fan_in, fan_out), jnp.float32, -bound, bound)
        b = jax.random.uniform(kb, (1, fan_out), jnp.float32, -bound, bound)
        params += [w, b]
    return tuple(params)


def reference_forward_f32(X, params):
    """Pure-f32 reference (the PyTorch semantics)."""
    w1, b1, w2, b2, w3, b3 = params
    h1 = jnp.maximum(X @ w1 + b1, 0.0)
    h2 = jnp.maximum(h1 @ w2 + b2, 0.0)
    return h2 @ w3 + b3


def reference_forward_mirrored(X, params):
    """Pure-JAX reference mirroring the kernel numerics (bf16 matmul inputs,
    f32 accumulation, f32 layer-3)."""
    w1, b1, w2, b2, w3, b3 = params
    rt = lambda a: a.astype(jnp.bfloat16).astype(jnp.float32)
    h1 = jnp.maximum(rt(X) @ rt(w1) + b1, 0.0)
    h2 = jnp.maximum(rt(h1) @ rt(w2) + b2, 0.0)
    return h2 @ w3 + b3


if __name__ == "__main__":
    history_span = 8
    input_size = 4
    batch = 16

    key = jax.random.PRNGKey(0)
    key, kx, ky = jax.random.split(key, 3)
    X = jax.random.normal(kx, (batch, history_span * input_size), jnp.float32)
    Y = jax.random.normal(ky, (batch, 1), jnp.float32)  # unused, interface parity

    params = init_params(key, history_span, input_size)

    out = dummy_mlp_forward(X, Y, params)
    out = jax.block_until_ready(out)
    assert out.shape == (batch, 1), out.shape

    ref_mirror = reference_forward_mirrored(X, params)
    ref_f32 = reference_forward_f32(X, params)
    assert jnp.allclose(out, ref_mirror, atol=1e-4, rtol=1e-4), \
        "mismatch vs bf16-mirrored reference"
    assert jnp.allclose(out, ref_f32, atol=5e-2, rtol=5e-2), \
        "mismatch vs f32 reference"

    print("KERNEL_OK")
</pallas_src>

<mosaic_0001>
module attributes {stable_mosaic.version = 11 : i64} {
  func.func @_mlp_kernel(%arg0: i32, %arg1: memref<32x128xbf16, #tpu.memory_space<vmem>>, %arg2: memref<50x32xbf16, #tpu.memory_space<vmem>>, %arg3: memref<50x1xf32, #tpu.memory_space<vmem>>, %arg4: memref<10x50xbf16, #tpu.memory_space<vmem>>, %arg5: memref<10x1xf32, #tpu.memory_space<vmem>>, %arg6: memref<10x1xf32, #tpu.memory_space<vmem>>, %arg7: memref<1x1xf32, #tpu.memory_space<vmem>>, %arg8: memref<1x128xf32, #tpu.memory_space<vmem>>) attributes {dimension_semantics = [#tpu.dimension_semantics<parallel>], iteration_bounds = array<i64: 1>, scalar_prefetch = 0 : i64, scratch_operands = 0 : i64, tpu.core_type = #tpu.core_type<tc>, window_params = [{transform_indices = @transform_0, window_bounds = array<i64: 32, 128>}, {pipeline_mode = #tpu.pipeline_mode<synchronous>, transform_indices = @transform_1, window_bounds = array<i64: 50, 32>}, {pipeline_mode = #tpu.pipeline_mode<synchronous>, transform_indices = @transform_2, window_bounds = array<i64: 50, 1>}, {pipeline_mode = #tpu.pipeline_mode<synchronous>, transform_indices = @transform_3, window_bounds = array<i64: 10, 50>}, {pipeline_mode = #tpu.pipeline_mode<synchronous>, transform_indices = @transform_4, window_bounds = array<i64: 10, 1>}, {pipeline_mode = #tpu.pipeline_mode<synchronous>, transform_indices = @transform_5, window_bounds = array<i64: 10, 1>}, {pipeline_mode = #tpu.pipeline_mode<synchronous>, transform_indices = @transform_6, window_bounds = array<i64: 1, 1>}, {transform_indices = @transform_7, window_bounds = array<i64: 1, 128>}]} {
    %c0 = arith.constant 0 : index
    %c0_0 = arith.constant 0 : index
    %0 = vector.load %arg1[%c0, %c0_0] : memref<32x128xbf16, #tpu.memory_space<vmem>>, vector<32x128xbf16>
    %c0_1 = arith.constant 0 : index
    %c0_2 = arith.constant 0 : index
    %1 = vector.load %arg2[%c0_1, %c0_2] : memref<50x32xbf16, #tpu.memory_space<vmem>>, vector<50x32xbf16>
    %cst = arith.constant dense<0.000000e+00> : vector<50x128xf32>
    %2 = tpu.matmul %1, %0, %cst {dimension_numbers = #tpu.dot_dimension_numbers<[1], [0], [0], [1], [0, 0, 1, 1], [], []>} : vector<50x32xbf16>, vector<32x128xbf16>, vector<50x128xf32> -> vector<50x128xf32>
    %c0_3 = arith.constant 0 : index
    %c0_4 = arith.constant 0 : index
    %3 = vector.load %arg3[%c0_3, %c0_4] : memref<50x1xf32, #tpu.memory_space<vmem>>, vector<50x1xf32>
    %4 = vector.broadcast %3 : vector<50x1xf32> to vector<50x128xf32>
    %5 = arith.addf %2, %4 : vector<50x128xf32>
    %cst_5 = arith.constant 0.000000e+00 : f32
    %6 = vector.broadcast %cst_5 : f32 to vector<50x128xf32>
    %7 = arith.maximumf %5, %6 : vector<50x128xf32>
    %c0_6 = arith.constant 0 : index
    %c0_7 = arith.constant 0 : index
    %8 = vector.load %arg4[%c0_6, %c0_7] : memref<10x50xbf16, #tpu.memory_space<vmem>>, vector<10x50xbf16>
    %9 = arith.truncf %7 : vector<50x128xf32> to vector<50x128xbf16>
    %cst_8 = arith.constant dense<0.000000e+00> : vector<10x128xf32>
    %10 = tpu.matmul %8, %9, %cst_8 {dimension_numbers = #tpu.dot_dimension_numbers<[1], [0], [0], [1], [0, 0, 1, 1], [], []>} : vector<10x50xbf16>, vector<50x128xbf16>, vector<10x128xf32> -> vector<10x128xf32>
    %c0_9 = arith.constant 0 : index
    %c0_10 = arith.constant 0 : index
    %11 = vector.load %arg5[%c0_9, %c0_10] : memref<10x1xf32, #tpu.memory_space<vmem>>, vector<10x1xf32>
    %12 = vector.broadcast %11 : vector<10x1xf32> to vector<10x128xf32>
    %13 = arith.addf %10, %12 : vector<10x128xf32>
    %cst_11 = arith.constant 0.000000e+00 : f32
    %14 = vector.broadcast %cst_11 : f32 to vector<10x128xf32>
    %15 = arith.maximumf %13, %14 : vector<10x128xf32>
    %c0_12 = arith.constant 0 : index
    %c0_13 = arith.constant 0 : index
    %16 = vector.load %arg6[%c0_12, %c0_13] : memref<10x1xf32, #tpu.memory_space<vmem>>, vector<10x1xf32>
    %17 = vector.broadcast %16 : vector<10x1xf32> to vector<10x128xf32>
    %18 = arith.mulf %15, %17 : vector<10x128xf32>
    %cst_14 = arith.constant dense<0.000000e+00> : vector<128xf32>
    %19 = vector.multi_reduction <add>, %18, %cst_14 [0] : vector<10x128xf32> to vector<128xf32>
    %20 = vector.shape_cast %19 : vector<128xf32> to vector<1x128xf32>
    %c0_15 = arith.constant 0 : index
    %c0_16 = arith.constant 0 : index
    %21 = vector.load %arg7[%c0_15, %c0_16] : memref<1x1xf32, #tpu.memory_space<vmem>>, vector<1x1xf32>
    %22 = vector.broadcast %21 : vector<1x1xf32> to vector<1x128xf32>
    %23 = arith.addf %20, %22 : vector<1x128xf32>
    %c0_17 = arith.constant 0 : index
    %c0_18 = arith.constant 0 : index
    %24 = vector.load %arg8[%c0_17, %c0_18] : memref<1x128xf32, #tpu.memory_space<vmem>>, vector<1x128xf32>
    tpu.vector_store %arg8[%c0_17, %c0_18], %23 {strides = array<i32>} : memref<1x128xf32, #tpu.memory_space<vmem>>, vector<1x128xf32>,
    return
  }
  func.func @transform_0(%arg0: i32) -> (i32, i32) {
    %c0_i32 = arith.constant 0 : i32
    %c0_i32_0 = arith.constant 0 : i32
    return %c0_i32, %arg0 : i32, i32
  }
  func.func @transform_1(%arg0: i32) -> (i32, i32) {
    %c0_i32 = arith.constant 0 : i32
    %c0_i32_0 = arith.constant 0 : i32
    %c0_i32_1 = arith.constant 0 : i32
    return %c0_i32, %c0_i32_0 : i32, i32
  }
  func.func @transform_2(%arg0: i32) -> (i32, i32) {
    %c0_i32 = arith.constant 0 : i32
    %c0_i32_0 = arith.constant 0 : i32
    %c0_i32_1 = arith.constant 0 : i32
    return %c0_i32, %c0_i32_0 : i32, i32
  }
  func.func @transform_3(%arg0: i32) -> (i32, i32) {
    %c0_i32 = arith.constant 0 : i32
    %c0_i32_0 = arith.constant 0 : i32
    %c0_i32_1 = arith.constant 0 : i32
    return %c0_i32, %c0_i32_0 : i32, i32
  }
  func.func @transform_4(%arg0: i32) -> (i32, i32) {
    %c0_i32 = arith.constant 0 : i32
    %c0_i32_0 = arith.constant 0 : i32
    %c0_i32_1 = arith.constant 0 : i32
    return %c0_i32, %c0_i32_0 : i32, i32
  }
  func.func @transform_5(%arg0: i32) -> (i32, i32) {
    %c0_i32 = arith.constant 0 : i32
    %c0_i32_0 = arith.constant 0 : i32
    %c0_i32_1 = arith.constant 0 : i32
    return %c0_i32, %c0_i32_0 : i32, i32
  }
  func.func @transform_6(%arg0: i32) -> (i32, i32) {
    %c0_i32 = arith.constant 0 : i32
    %c0_i32_0 = arith.constant 0 : i32
    %c0_i32_1 = arith.constant 0 : i32
    return %c0_i32, %c0_i32_0 : i32, i32
  }
  func.func @transform_7(%arg0: i32) -> (i32, i32) {
    %c0_i32 = arith.constant 0 : i32
    %c0_i32_0 = arith.constant 0 : i32
    return %c0_i32, %arg0 : i32, i32
  }
}

module attributes {stable_mosaic.version = 11 : i64} {
  func.func @_mlp_kernel(%arg0: i32, %arg1: memref<32x128xbf16, #tpu.memory_space<vmem>>, %arg2: memref<50x32xbf16, #tpu.memory_space<vmem>>, %arg3: memref<50x1xf32, #tpu.memory_space<vmem>>, %arg4: memref<10x50xbf16, #tpu.memory_space<vmem>>, %arg5: memref<10x1xf32, #tpu.memory_space<vmem>>, %arg6: memref<10x1xf32, #tpu.memory_space<vmem>>, %arg7: memref<1x1xf32, #tpu.memory_space<vmem>>, %arg8: memref<1x128xf32, #tpu.memory_space<vmem>>) attributes {dimension_semantics = [#tpu.dimension_semantics<parallel>], iteration_bounds = array<i64: 1>, scalar_prefetch = 0 : i64, scratch_operands = 0 : i64, tpu.core_type = #tpu.core_type<tc>, window_params = [{transform_indices = @transform_0, window_bounds = array<i64: 32, 128>}, {pipeline_mode = #tpu.pipeline_mode<synchronous>, transform_indices = @transform_1, window_bounds = array<i64: 50, 32>}, {pipeline_mode = #tpu.pipeline_mode<synchronous>, transform_indices = @transform_2, window_bounds = array<i64: 50, 1>}, {pipeline_mode = #tpu.pipeline_mode<synchronous>, transform_indices = @transform_3, window_bounds = array<i64: 10, 50>}, {pipeline_mode = #tpu.pipeline_mode<synchronous>, transform_indices = @transform_4, window_bounds = array<i64: 10, 1>}, {pipeline_mode = #tpu.pipeline_mode<synchronous>, transform_indices = @transform_5, window_bounds = array<i64: 10, 1>}, {pipeline_mode = #tpu.pipeline_mode<synchronous>, transform_indices = @transform_6, window_bounds = array<i64: 1, 1>}, {transform_indices = @transform_7, window_bounds = array<i64: 1, 128>}]} {
    %c0 = arith.constant 0 : index
    %c0_0 = arith.constant 0 : index
    %0 = vector.load %arg1[%c0, %c0_0] : memref<32x128xbf16, #tpu.memory_space<vmem>>, vector<32x128xbf16>
    %c0_1 = arith.constant 0 : index
    %c0_2 = arith.constant 0 : index
    %1 = vector.load %arg2[%c0_1, %c0_2] : memref<50x32xbf16, #tpu.memory_space<vmem>>, vector<50x32xbf16>
    %cst = arith.constant dense<0.000000e+00> : vector<50x128xf32>
    %2 = tpu.matmul %1, %0, %cst {dimension_numbers = #tpu.dot_dimension_numbers<[1], [0], [0], [1], [0, 0, 1, 1], [], []>} : vector<50x32xbf16>, vector<32x128xbf16>, vector<50x128xf32> -> vector<50x128xf32>
    %c0_3 = arith.constant 0 : index
    %c0_4 = arith.constant 0 : index
    %3 = vector.load %arg3[%c0_3, %c0_4] : memref<50x1xf32, #tpu.memory_space<vmem>>, vector<50x1xf32>
    %4 = vector.broadcast %3 : vector<50x1xf32> to vector<50x128xf32>
    %5 = arith.addf %2, %4 : vector<50x128xf32>
    %cst_5 = arith.constant 0.000000e+00 : f32
    %6 = vector.broadcast %cst_5 : f32 to vector<50x128xf32>
    %7 = arith.maximumf %5, %6 : vector<50x128xf32>
    %c0_6 = arith.constant 0 : index
    %c0_7 = arith.constant 0 : index
    %8 = vector.load %arg4[%c0_6, %c0_7] : memref<10x50xbf16, #tpu.memory_space<vmem>>, vector<10x50xbf16>
    %9 = arith.truncf %7 : vector<50x128xf32> to vector<50x128xbf16>
    %cst_8 = arith.constant dense<0.000000e+00> : vector<10x128xf32>
    %10 = tpu.matmul %8, %9, %cst_8 {dimension_numbers = #tpu.dot_dimension_numbers<[1], [0], [0], [1], [0, 0, 1, 1], [], []>} : vector<10x50xbf16>, vector<50x128xbf16>, vector<10x128xf32> -> vector<10x128xf32>
    %c0_9 = arith.constant 0 : index
    %c0_10 = arith.constant 0 : index
    %11 = vector.load %arg5[%c0_9, %c0_10] : memref<10x1xf32, #tpu.memory_space<vmem>>, vector<10x1xf32>
    %12 = vector.broadcast %11 : vector<10x1xf32> to vector<10x128xf32>
    %13 = arith.addf %10, %12 : vector<10x128xf32>
    %cst_11 = arith.constant 0.000000e+00 : f32
    %14 = vector.broadcast %cst_11 : f32 to vector<10x128xf32>
    %15 = arith.maximumf %13, %14 : vector<10x128xf32>
    %c0_12 = arith.constant 0 : index
    %c0_13 = arith.constant 0 : index
    %16 = vector.load %arg6[%c0_12, %c0_13] : memref<10x1xf32, #tpu.memory_space<vmem>>, vector<10x1xf32>
    %17 = vector.broadcast %16 : vector<10x1xf32> to vector<10x128xf32>
    %18 = arith.mulf %15, %17 : vector<10x128xf32>
    %cst_14 = arith.constant dense<0.000000e+00> : vector<128xf32>
    %19 = vector.multi_reduction <add>, %18, %cst_14 [0] : vector<10x128xf32> to vector<128xf32>
    %20 = vector.shape_cast %19 : vector<128xf32> to vector<1x128xf32>
    %c0_15 = arith.constant 0 : index
    %c0_16 = arith.constant 0 : index
    %21 = vector.load %arg7[%c0_15, %c0_16] : memref<1x1xf32, #tpu.memory_space<vmem>>, vector<1x1xf32>
    %22 = vector.broadcast %21 : vector<1x1xf32> to vector<1x128xf32>
    %23 = arith.addf %20, %22 : vector<1x128xf32>
    %c0_17 = arith.constant 0 : index
    %c0_18 = arith.constant 0 : index
    %24 = vector.load %arg8[%c0_17, %c0_18] : memref<1x128xf32, #tpu.memory_space<vmem>>, vector<1x128xf32>
    tpu.vector_store %arg8[%c0_17, %c0_18], %23 {strides = array<i32>} : memref<1x128xf32, #tpu.memory_space<vmem>>, vector<1x128xf32>,
    return
  }
  func.func @transform_0(%arg0: i32) -> (i32, i32) {
    %c0_i32 = arith.constant 0 : i32
    %c0_i32_0 = arith.constant 0 : i32
    return %c0_i32, %arg0 : i32, i32
  }
  func.func @transform_1(%arg0: i32) -> (i32, i32) {
    %c0_i32 = arith.constant 0 : i32
    %c0_i32_0 = arith.constant 0 : i32
    %c0_i32_1 = arith.constant 0 : i32
    return %c0_i32, %c0_i32_0 : i32, i32
  }
  func.func @transform_2(%arg0: i32) -> (i32, i32) {
    %c0_i32 = arith.constant 0 : i32
    %c0_i32_0 = arith.constant 0 : i32
    %c0_i32_1 = arith.constant 0 : i32
    return %c0_i32, %c0_i32_0 : i32, i32
  }
  func.func @transform_3(%arg0: i32) -> (i32, i32) {
    %c0_i32 = arith.constant 0 : i32
    %c0_i32_0 = arith.constant 0 : i32
    %c0_i32_1 = arith.constant 0 : i32
    return %c0_i32, %c0_i32_0 : i32, i32
  }
  func.func @transform_4(%arg0: i32) -> (i32, i32) {
    %c0_i32 = arith.constant 0 : i32
    %c0_i32_0 = arith.constant 0 : i32
    %c0_i32_1 = arith.constant 0 : i32
    return %c0_i32, %c0_i32_0 : i32, i32
  }
  func.func @transform_5(%arg0: i32) -> (i32, i32) {
    %c0_i32 = arith.constant 0 : i32
    %c0_i32_0 = arith.constant 0 : i32
    %c0_i32_1 = arith.constant 0 : i32
    return %c0_i32, %c0_i32_0 : i32, i32
  }
  func.func @transform_6(%arg0: i32) -> (i32, i32) {
    %c0_i32 = arith.constant 0 : i32
    %c0_i32_0 = arith.constant 0 : i32
    %c0_i32_1 = arith.constant 0 : i32
    return %c0_i32, %c0_i32_0 : i32, i32
  }
  func.func @transform_7(%arg0: i32) -> (i32, i32) {
    %c0_i32 = arith.constant 0 : i32
    %c0_i32_0 = arith.constant 0 : i32
    return %c0_i32, %arg0 : i32, i32
  }
}

</mosaic_0001>

<llo_original>
// kernel: tpu_custom_call.1
$region0: #{tpu_custom_call.1}
  #allocation0 [shape = 'u32[]', space=smem, size = 0x4, offset = 0x4, fixed_abs, tag = 'smem constant byte address 0x4 - core index']
  #allocation1 [shape = 'u32[144,128]{1,0:T(1,128)}', space=vmem, size = 0x12000, scoped, tag = 'internal scratch']
  #allocation2 [shape = 'f32[1,1]{1,0:T(1,128)S(1)}', space=vmem, size = 0x200, scoped, tag = 'scoped memory for tpu_custom_call.1']
  %s0 = inlined_call_operand.vmem [shape: bf16[32,128], index: 0, kind: input, shape index: {}]
  %s1 = inlined_call_operand.vmem [shape: bf16[50,32], index: 1, kind: input, shape index: {}]
  %s2 = inlined_call_operand.vmem [shape: f32[50,1], index: 2, kind: input, shape index: {}]
  %s3 = inlined_call_operand.vmem [shape: bf16[10,50], index: 3, kind: input, shape index: {}]
  %s4 = inlined_call_operand.vmem [shape: f32[10,1], index: 4, kind: input, shape index: {}]
  %s5 = inlined_call_operand.vmem [shape: f32[10,1], index: 5, kind: input, shape index: {}]
  %s6 = inlined_call_operand.<no memory space> [shape: f32[1,1], index: 6, kind: input, shape index: {}]
  %s7 = inlined_call_operand.hbm [shape: f32[1,128], index: 7, kind: output, shape index: {}]
  %s8 = sld [smem:[#allocation0]]
  $region38: #{tpu_custom_call.1} parent=0
    _
  %s10 = ssub.s32 1, %s8
  %s11 = scalar_select 0, %s10, %s8
  %v12 = vstv %s6
  %13 = vst [vmem:[#allocation2] sm:$0x1] %v12
  $region1: #{tpu_custom_call.1} parent=0
    #allocation3 [shape = 'u8[512]{0}', space=vmem, size = 0x400, scoped, tag = 'output window, operand 0, single buffered']
    #allocation4 [shape = 's32[1]{0}', space=sflag, size = 0x4, scoped, tag = 'scoped memory for tpu_custom_call.1']
    %14 = vsyncpa [#allocation4], 0
    // Predicated region
    $region2: #{tpu_custom_call.1} parent=1 // pred_check
      _
    $region3: #{tpu_custom_call.1} parent=1 // pred_check_branch
      %16 = sbr.rel (0) target = $region5
    $region4: #{tpu_custom_call.1} parent=1 // pred_region
      _
    $region5: #{tpu_custom_call.1} parent=1 // pred_fallthru
      _
    // Predicated region
    $region6: #{tpu_custom_call.1} parent=1 // pred_check
      _
    $region7: #{tpu_custom_call.1} parent=1 // pred_check_branch
      %18 = sbr.rel (0) target = $region9
    $region8: #{tpu_custom_call.1} parent=1 // pred_region
      _
    $region9: #{tpu_custom_call.1} parent=1 // pred_fallthru
      _
    // Predicated region
    $region10: #{tpu_custom_call.1} parent=1 // pred_check
      _
    $region11: #{tpu_custom_call.1} parent=1 // pred_check_branch
      %20 = sbr.rel (0) target = $region13
    $region12: #{tpu_custom_call.1} parent=1 // pred_region
      _
    $region13: #{tpu_custom_call.1} parent=1 // pred_fallthru
      _
    // Predicated region
    $region14: #{tpu_custom_call.1} parent=1 // pred_check
      _
    $region15: #{tpu_custom_call.1} parent=1 // pred_check_branch
      %22 = sbr.rel (0) target = $region17
    $region16: #{tpu_custom_call.1} parent=1 // pred_region
      _
    $region17: #{tpu_custom_call.1} parent=1 // pred_fallthru
      _
    // Predicated region
    $region18: #{tpu_custom_call.1} parent=1 // pred_check
      _
    $region19: #{tpu_custom_call.1} parent=1 // pred_check_branch
      %24 = sbr.rel (0) target = $region21
    $region20: #{tpu_custom_call.1} parent=1 // pred_region
      _
    $region21: #{tpu_custom_call.1} parent=1 // pred_fallthru
      _
    // Predicated region
    $region22: #{tpu_custom_call.1} parent=1 // pred_check
      _
    $region23: #{tpu_custom_call.1} parent=1 // pred_check_branch
      %26 = sbr.rel (0) target = $region25
    $region24: #{tpu_custom_call.1} parent=1 // pred_region
      _
    $region25: #{tpu_custom_call.1} parent=1 // pred_fallthru
      _
    // Predicated region
    $region26: #{tpu_custom_call.1} parent=1 // pred_check
      _
    $region27: #{tpu_custom_call.1} parent=1 // pred_check_branch
      %28 = sbr.rel (0) target = $region29
    $region28: #{tpu_custom_call.1} parent=1 // pred_region
      _
    $region29: #{tpu_custom_call.1} parent=1 // pred_fallthru
      _
    %v30 = vld [vmem:[%s0] sm:$0xf]
    %v31 = vld [vmem:[%s0 + $0x4] sm:$0xf]
    %v32 = vld [vmem:[%s0 + $0x8] sm:$0xf]
    %v33 = vld [vmem:[%s0 + $0xc] sm:$0xf]
    %v34 = vld [vmem:[%s1] sm:$0xf]
    %v35 = vld [vmem:[%s1 + $0x4] sm:$0xf]
    %v36 = vld [vmem:[%s1 + $0x8] sm:$0xf]
    %v37 = vld [vmem:[%s1 + $0xc] sm:$0xf]
    %v38 = vld [vmem:[%s1 + $0x10] sm:$0xf]
    %v39 = vld [vmem:[%s1 + $0x14] sm:$0xf]
    %v40 = vld [vmem:[%s1 + $0x18] sm:$0x1]
    %v41 = vld [vmem:[%s2] sm:$0xff]
    %v42 = vld [vmem:[%s2 + $0x8] sm:$0xff]
    %v43 = vld [vmem:[%s2 + $0x10] sm:$0xff]
    %v44 = vld [vmem:[%s2 + $0x18] sm:$0xff]
    %v45 = vld [vmem:[%s2 + $0x20] sm:$0xff]
    %v46 = vld [vmem:[%s2 + $0x28] sm:$0xff]
    %v47 = vld [vmem:[%s2 + $0x30] sm:$0x3]
    %49 = vset.pattern.permute.xlu0 0
    %50 = vperm.xlu0 %49, %v41
    %v51 = vpop.permute.xlu0 %50
    %54 = vset.pattern.permute.xlu0 0
    %55 = vperm.xlu0 %54, %v42
    %v56 = vpop.permute.xlu0 %55
    %59 = vset.pattern.permute.xlu0 0
    %60 = vperm.xlu0 %59, %v43
    %v61 = vpop.permute.xlu0 %60
    %64 = vset.pattern.permute.xlu0 0
    %65 = vperm.xlu0 %64, %v44
    %v66 = vpop.permute.xlu0 %65
    %69 = vset.pattern.permute.xlu0 0
    %70 = vperm.xlu0 %69, %v45
    %v71 = vpop.permute.xlu0 %70
    %74 = vset.pattern.permute.xlu0 0
    %75 = vperm.xlu0 %74, %v46
    %v76 = vpop.permute.xlu0 %75
    %79 = vset.pattern.permute.xlu0 0
    %80 = vperm.xlu0 %79, %v47
    %v81 = vpop.permute.xlu0 %80
    %v90 = vunpack.c.l.b16 %v34
    %v91 = vunpack.c.l.b16 %v35
    %v92 = vunpack.c.l.b16 %v36
    %v93 = vunpack.c.l.b16 %v37
    %v94 = vunpack.c.l.b16 %v38
    %v95 = vunpack.c.l.b16 %v39
    %v96 = vunpack.c.l.b16 %v40
    %v97 = vpack.c.b16 %v91, %v90
    %v98 = vpack.c.b16 %v93, %v92
    %v99 = vpack.c.b16 %v95, %v94
    %v100 = vpack.c.b16 %v96, %v96
    %v105 = vunpack.c.l.b16 %v30
    %v106 = vunpack.c.l.b16 %v31
    %v107 = vunpack.c.l.b16 %v32
    %v108 = vunpack.c.l.b16 %v33
    %v109 = vpack.c.b16 %v106, %v105
    %v110 = vpack.c.b16 %v108, %v107
    %vm113 = vcmask 261120
    %v115 = vsel %vm113, %v97, 0
    %v118 = vsel %vm113, %v98, 0
    %v121 = vsel %vm113, %v99, 0
    %v124 = vsel %vm113, %v100, 0
    %126 = vmatprep.subr.bf16.mxu0 0
    %127 = vmatpush1.bf16.msra.mxu0 %v109
    %128 = vmatprep.subr.bf16.mxu0 0
    %129 = vmatpush1.bf16.msra.mxu0 %v110
    %130 = vmatprep.subr.bf16.mxu0 0
    %131 = vmatpush1.bf16.msra.mxu0 0
    %132 = vmatprep.subr.bf16.mxu0 0
    %133 = vmatpush1.bf16.msra.mxu0 0
    %134 = vmatprep.subr.bf16.mxu0 0
    %135 = vmatpush1.bf16.msra.mxu0 0
    %136 = vmatprep.subr.bf16.mxu0 0
    %137 = vmatpush1.bf16.msra.mxu0 0
    %138 = vmatprep.subr.bf16.mxu0 0
    %139 = vmatpush1.bf16.msra.mxu0 0
    %140 = vmatprep.subr.bf16.mxu0 0
    %141 = vmatpush1.bf16.msra.mxu0 0
    %142 = vmatprep.subr.bf16.mxu0 0
    %143 = vmatpush1.bf16.msra.mxu0 0
    %144 = vmatprep.subr.bf16.mxu0 0
    %145 = vmatpush1.bf16.msra.mxu0 0
    %146 = vmatprep.subr.bf16.mxu0 0
    %147 = vmatpush1.bf16.msra.mxu0 0
    %148 = vmatprep.subr.bf16.mxu0 0
    %149 = vmatpush1.bf16.msra.mxu0 0
    %150 = vmatprep.subr.bf16.mxu0 0
    %151 = vmatpush1.bf16.msra.mxu0 0
    %152 = vmatprep.subr.bf16.mxu0 0
    %153 = vmatpush1.bf16.msra.mxu0 0
    %154 = vmatprep.subr.bf16.mxu0 0
    %155 = vmatpush1.bf16.msra.mxu0 0
    %156 = vmatprep.subr.bf16.mxu0 0
    %157 = vmatpush1.bf16.msra.mxu0 0
    %158 = vmatprep.mubr.bf16.mxu0 0
    %159 = vmatmul.mubr.bf16.gmra.mrb[0].mxu0 %v115
    %v160 = vpop.f32.mrb[0].mxu0
    %v161 = vadd.f32 %v51, %v160
    %v162 = vpop.f32.mrb[0].mxu0
    %v163 = vpop.f32.mrb[0].mxu0
    %v164 = vadd.f32 %v56, %v163
    %v165 = vpop.f32.mrb[0].mxu0
    %166 = vmatprep.mubr.bf16.mxu0 0
    %167 = vmatmul.mubr.bf16.gmra.mrb[0].mxu0 %v118
    %v168 = vpop.f32.mrb[0].mxu0
    %v169 = vadd.f32 %v61, %v168
    %v170 = vpop.f32.mrb[0].mxu0
    %v171 = vpop.f32.mrb[0].mxu0
    %v172 = vadd.f32 %v66, %v171
    %v173 = vpop.f32.mrb[0].mxu0
    %174 = vmatprep.mubr.bf16.mxu0 0
    %175 = vmatmul.mubr.bf16.gmra.mrb[0].mxu0 %v121
    %v176 = vpop.f32.mrb[0].mxu0
    %v177 = vadd.f32 %v71, %v176
    %v178 = vpop.f32.mrb[0].mxu0
    %v179 = vpop.f32.mrb[0].mxu0
    %v180 = vadd.f32 %v76, %v179
    %v181 = vpop.f32.mrb[0].mxu0
    %182 = vmatprep.mubr.bf16.mxu0 0
    %183 = vmatmul.mubr.bf16.gmra.mrb[0].mxu0 %v124
    %v184 = vpop.f32.mrb[0].mxu0
    %v185 = vadd.f32 %v81, %v184
    %v186 = vpop.f32.mrb[0].mxu0
    %v187 = vpop.f32.mrb[0].mxu0
    %v188 = vpop.f32.mrb[0].mxu0
    %189 = vdwg.mxu0
    %v190 = vmax.f32 %v161, 0.0
    %v191 = vmax.f32 %v164, 0.0
    %v192 = vmax.f32 %v169, 0.0
    %v193 = vmax.f32 %v172, 0.0
    %v194 = vmax.f32 %v177, 0.0
    %v195 = vmax.f32 %v180, 0.0
    %v196 = vmax.f32 %v185, 0.0
    %v197 = vld [vmem:[%s3] sm:$0xf]
    %v198 = vld [vmem:[%s3 + $0x4] sm:$0x1]
    %v199 = vpack.c.bf16 %v191, %v190
    %v200 = vpack.c.bf16 %v193, %v192
    %v201 = vpack.c.bf16 %v195, %v194
    %v202 = vpack.c.bf16 %v196, %v196
    %v203 = vld [vmem:[%s4] sm:$0xff]
    %v204 = vld [vmem:[%s4 + $0x8] sm:$0x3]
    %206 = vset.pattern.permute.xlu0 0
    %207 = vperm.xlu0 %206, %v203
    %v208 = vpop.permute.xlu0 %207
    %211 = vset.pattern.permute.xlu0 0
    %212 = vperm.xlu0 %211, %v204
    %v213 = vpop.permute.xlu0 %212
    %v217 = vunpack.c.l.b16 %v197
    %v218 = vunpack.c.l.b16 %v198
    %v219 = vpack.c.b16 %v218, %v217
    %vm220 = vcmask 408576
    %v222 = vsel %vm220, %v219, 0
    %vm224 = vcmask 1040384
    %v226 = vsel %vm224, %v202, 0
    %228 = vmatprep.subr.bf16.mxu0 0
    %229 = vmatpush1.bf16.msra.mxu0 %v199
    %230 = vmatprep.subr.bf16.mxu0 0
    %231 = vmatpush1.bf16.msra.mxu0 %v200
    %232 = vmatprep.subr.bf16.mxu0 0
    %233 = vmatpush1.bf16.msra.mxu0 %v201
    %234 = vmatprep.subr.bf16.mxu0 0
    %235 = vmatpush1.bf16.msra.mxu0 %v226
    %236 = vmatprep.subr.bf16.mxu0 0
    %237 = vmatpush1.bf16.msra.mxu0 0
    %238 = vmatprep.subr.bf16.mxu0 0
    %239 = vmatpush1.bf16.msra.mxu0 0
    %240 = vmatprep.subr.bf16.mxu0 0
    %241 = vmatpush1.bf16.msra.mxu0 0
    %242 = vmatprep.subr.bf16.mxu0 0
    %243 = vmatpush1.bf16.msra.mxu0 0
    %244 = vmatprep.subr.bf16.mxu0 0
    %245 = vmatpush1.bf16.msra.mxu0 0
    %246 = vmatprep.subr.bf16.mxu0 0
    %247 = vmatpush1.bf16.msra.mxu0 0
    %248 = vmatprep.subr.bf16.mxu0 0
    %249 = vmatpush1.bf16.msra.mxu0 0
    %250 = vmatprep.subr.bf16.mxu0 0
    %251 = vmatpush1.bf16.msra.mxu0 0
    %252 = vmatprep.subr.bf16.mxu0 0
    %253 = vmatpush1.bf16.msra.mxu0 0
    %254 = vmatprep.subr.bf16.mxu0 0
    %255 = vmatpush1.bf16.msra.mxu0 0
    %256 = vmatprep.subr.bf16.mxu0 0
    %257 = vmatpush1.bf16.msra.mxu0 0
    %258 = vmatprep.subr.bf16.mxu0 0
    %259 = vmatpush1.bf16.msra.mxu0 0
    %260 = vmatprep.mubr.bf16.mxu0 0
    %261 = vmatmul.mubr.bf16.gmra.mrb[0].mxu0 %v222
    %v262 = vpop.f32.mrb[0].mxu0
    %v263 = vadd.f32 %v208, %v262
    %v264 = vpop.f32.mrb[0].mxu0
    %v265 = vpop.f32.mrb[0].mxu0
    %v266 = vadd.f32 %v213, %v265
    %v267 = vpop.f32.mrb[0].mxu0
    %268 = vdwg.mxu0
    %v269 = vmax.f32 %v263, 0.0
    %v270 = vmax.f32 %v266, 0.0
    %v271 = vld [vmem:[%s5] sm:$0xff]
    %v272 = vld [vmem:[%s5 + $0x8] sm:$0x3]
    %274 = vset.pattern.permute.xlu0 0
    %275 = vperm.xlu0 %274, %v271
    %v276 = vpop.permute.xlu0 %275
    %279 = vset.pattern.permute.xlu0 0
    %280 = vperm.xlu0 %279, %v272
    %v281 = vpop.permute.xlu0 %280
    %v283 = vmul.f32 %v269, %v276
    %v284 = vmul.f32 %v270, %v281
    %vm285 = vcmask 1041408
    %v286 = vsel %vm285, %v284, 0.0
    %v287 = vadd.f32 %v283, %v286
    %v288 = vrot.slane %v287, 4
    %v289 = vadd.f32 %v287, %v288
    %v290 = vrot.slane %v289, 2
    %v291 = vadd.f32 %v289, %v290
    %v292 = vrot.slane %v291, 1
    %v293 = vadd.f32 %v291, %v292
    %v294 = vld [vmem:[#allocation2] sm:$0x1]
    %296 = vset.pattern.permute.xlu0 0
    %297 = vperm.xlu0 %296, %v294
    %v298 = vpop.permute.xlu0 %297
    %v300 = vlaneseq
    %v301 = vshrl.u32 %v300, 7
    %v302 = vsub.s32 0, %v301
    %v303 = vrot.slane %v298, %v302
    %v304 = vadd.f32 %v293, %v303
    %305 = vst [vmem:[#allocation3] sm:$0x1] %v304
    // Predicated region
    $region30: #{tpu_custom_call.1} parent=1 // pred_check
      _
    $region31: #{tpu_custom_call.1} parent=1 // pred_check_branch
      %307 = sbr.rel (0) target = $region33
    $region32: #{tpu_custom_call.1} parent=1 // pred_region
      %s309 = ssub.s32 16, 16
      %310 = vsyncadd [#allocation4], %s309
      %s312 = sshll.u32 [#allocation3], 4
      %s313 = int_to_ptr.vmem [resolvable:$true] %s312
      %315 = dma.vmem_to_hbm [thread:$0]  %s313, 16, %s7, [#allocation4]
    $region33: #{tpu_custom_call.1} parent=1 // pred_fallthru
      _
    // Predicated region
    $region34: #{tpu_custom_call.1} parent=1 // pred_check
      _
    $region35: #{tpu_custom_call.1} parent=1 // pred_check_branch
      %317 = sbr.rel (0) target = $region37
    $region36: #{tpu_custom_call.1} parent=1 // pred_region
      %318 = dma.done [#allocation4], 16
    $region37: #{tpu_custom_call.1} parent=1 // pred_fallthru
      _
    %319 = vsyncpa [#allocation4], 1

// kernel: tpu_custom_call.1
$region0: #{tpu_custom_call.1}
  #allocation0 [shape = 'u32[]', space=smem, size = 0x4, offset = 0x4, fixed_abs, tag = 'smem constant byte address 0x4 - core index']
  #allocation1 [shape = 'u32[144,128]{1,0:T(1,128)}', space=vmem, size = 0x12000, scoped, tag = 'internal scratch']
  #allocation2 [shape = 'f32[1,1]{1,0:T(1,128)S(1)}', space=vmem, size = 0x200, scoped, tag = 'scoped memory for tpu_custom_call.1']
  %s0 = inlined_call_operand.vmem [shape: bf16[32,128], index: 0, kind: input, shape index: {}]
  %s1 = inlined_call_operand.vmem [shape: bf16[50,32], index: 1, kind: input, shape index: {}]
  %s2 = inlined_call_operand.vmem [shape: f32[50,1], index: 2, kind: input, shape index: {}]
  %s3 = inlined_call_operand.vmem [shape: bf16[10,50], index: 3, kind: input, shape index: {}]
  %s4 = inlined_call_operand.vmem [shape: f32[10,1], index: 4, kind: input, shape index: {}]
  %s5 = inlined_call_operand.vmem [shape: f32[10,1], index: 5, kind: input, shape index: {}]
  %s6 = inlined_call_operand.<no memory space> [shape: f32[1,1], index: 6, kind: input, shape index: {}]
  %s7 = inlined_call_operand.hbm [shape: f32[1,128], index: 7, kind: output, shape index: {}]
  %s8 = sld [smem:[#allocation0]]
  $region38: #{tpu_custom_call.1} parent=0
    _
  %s10 = ssub.s32 1, %s8
  %s11 = scalar_select 0, %s10, %s8
  %v12 = vstv %s6
  %13 = vst [vmem:[#allocation2] sm:$0x1] %v12
  $region1: #{tpu_custom_call.1} parent=0
    #allocation3 [shape = 'u8[512]{0}', space=vmem, size = 0x400, scoped, tag = 'output window, operand 0, single buffered']
    #allocation4 [shape = 's32[1]{0}', space=sflag, size = 0x4, scoped, tag = 'scoped memory for tpu_custom_call.1']
    %14 = vsyncpa [#allocation4], 0
    // Predicated region
    $region2: #{tpu_custom_call.1} parent=1 // pred_check
      _
    $region3: #{tpu_custom_call.1} parent=1 // pred_check_branch
      %16 = sbr.rel (0) target = $region5
    $region4: #{tpu_custom_call.1} parent=1 // pred_region
      _
    $region5: #{tpu_custom_call.1} parent=1 // pred_fallthru
      _
    // Predicated region
    $region6: #{tpu_custom_call.1} parent=1 // pred_check
      _
    $region7: #{tpu_custom_call.1} parent=1 // pred_check_branch
      %18 = sbr.rel (0) target = $region9
    $region8: #{tpu_custom_call.1} parent=1 // pred_region
      _
    $region9: #{tpu_custom_call.1} parent=1 // pred_fallthru
      _
    // Predicated region
    $region10: #{tpu_custom_call.1} parent=1 // pred_check
      _
    $region11: #{tpu_custom_call.1} parent=1 // pred_check_branch
      %20 = sbr.rel (0) target = $region13
    $region12: #{tpu_custom_call.1} parent=1 // pred_region
      _
    $region13: #{tpu_custom_call.1} parent=1 // pred_fallthru
      _
    // Predicated region
    $region14: #{tpu_custom_call.1} parent=1 // pred_check
      _
    $region15: #{tpu_custom_call.1} parent=1 // pred_check_branch
      %22 = sbr.rel (0) target = $region17
    $region16: #{tpu_custom_call.1} parent=1 // pred_region
      _
    $region17: #{tpu_custom_call.1} parent=1 // pred_fallthru
      _
    // Predicated region
    $region18: #{tpu_custom_call.1} parent=1 // pred_check
      _
    $region19: #{tpu_custom_call.1} parent=1 // pred_check_branch
      %24 = sbr.rel (0) target = $region21
    $region20: #{tpu_custom_call.1} parent=1 // pred_region
      _
    $region21: #{tpu_custom_call.1} parent=1 // pred_fallthru
      _
    // Predicated region
    $region22: #{tpu_custom_call.1} parent=1 // pred_check
      _
    $region23: #{tpu_custom_call.1} parent=1 // pred_check_branch
      %26 = sbr.rel (0) target = $region25
    $region24: #{tpu_custom_call.1} parent=1 // pred_region
      _
    $region25: #{tpu_custom_call.1} parent=1 // pred_fallthru
      _
    // Predicated region
    $region26: #{tpu_custom_call.1} parent=1 // pred_check
      _
    $region27: #{tpu_custom_call.1} parent=1 // pred_check_branch
      %28 = sbr.rel (0) target = $region29
    $region28: #{tpu_custom_call.1} parent=1 // pred_region
      _
    $region29: #{tpu_custom_call.1} parent=1 // pred_fallthru
      _
    %v30 = vld [vmem:[%s0] sm:$0xf]
    %v31 = vld [vmem:[%s0 + $0x4] sm:$0xf]
    %v32 = vld [vmem:[%s0 + $0x8] sm:$0xf]
    %v33 = vld [vmem:[%s0 + $0xc] sm:$0xf]
    %v34 = vld [vmem:[%s1] sm:$0xf]
    %v35 = vld [vmem:[%s1 + $0x4] sm:$0xf]
    %v36 = vld [vmem:[%s1 + $0x8] sm:$0xf]
    %v37 = vld [vmem:[%s1 + $0xc] sm:$0xf]
    %v38 = vld [vmem:[%s1 + $0x10] sm:$0xf]
    %v39 = vld [vmem:[%s1 + $0x14] sm:$0xf]
    %v40 = vld [vmem:[%s1 + $0x18] sm:$0x1]
    %v41 = vld [vmem:[%s2] sm:$0xff]
    %v42 = vld [vmem:[%s2 + $0x8] sm:$0xff]
    %v43 = vld [vmem:[%s2 + $0x10] sm:$0xff]
    %v44 = vld [vmem:[%s2 + $0x18] sm:$0xff]
    %v45 = vld [vmem:[%s2 + $0x20] sm:$0xff]
    %v46 = vld [vmem:[%s2 + $0x28] sm:$0xff]
    %v47 = vld [vmem:[%s2 + $0x30] sm:$0x3]
    %49 = vset.pattern.permute.xlu0 0
    %50 = vperm.xlu0 %49, %v41
    %v51 = vpop.permute.xlu0 %50
    %54 = vset.pattern.permute.xlu0 0
    %55 = vperm.xlu0 %54, %v42
    %v56 = vpop.permute.xlu0 %55
    %59 = vset.pattern.permute.xlu0 0
    %60 = vperm.xlu0 %59, %v43
    %v61 = vpop.permute.xlu0 %60
    %64 = vset.pattern.permute.xlu0 0
    %65 = vperm.xlu0 %64, %v44
    %v66 = vpop.permute.xlu0 %65
    %69 = vset.pattern.permute.xlu0 0
    %70 = vperm.xlu0 %69, %v45
    %v71 = vpop.permute.xlu0 %70
    %74 = vset.pattern.permute.xlu0 0
    %75 = vperm.xlu0 %74, %v46
    %v76 = vpop.permute.xlu0 %75
    %79 = vset.pattern.permute.xlu0 0
    %80 = vperm.xlu0 %79, %v47
    %v81 = vpop.permute.xlu0 %80
    %v90 = vunpack.c.l.b16 %v34
    %v91 = vunpack.c.l.b16 %v35
    %v92 = vunpack.c.l.b16 %v36
    %v93 = vunpack.c.l.b16 %v37
    %v94 = vunpack.c.l.b16 %v38
    %v95 = vunpack.c.l.b16 %v39
    %v96 = vunpack.c.l.b16 %v40
    %v97 = vpack.c.b16 %v91, %v90
    %v98 = vpack.c.b16 %v93, %v92
    %v99 = vpack.c.b16 %v95, %v94
    %v100 = vpack.c.b16 %v96, %v96
    %v105 = vunpack.c.l.b16 %v30
    %v106 = vunpack.c.l.b16 %v31
    %v107 = vunpack.c.l.b16 %v32
    %v108 = vunpack.c.l.b16 %v33
    %v109 = vpack.c.b16 %v106, %v105
    %v110 = vpack.c.b16 %v108, %v107
    %vm113 = vcmask 261120
    %v115 = vsel %vm113, %v97, 0
    %v118 = vsel %vm113, %v98, 0
    %v121 = vsel %vm113, %v99, 0
    %v124 = vsel %vm113, %v100, 0
    %126 = vmatprep.subr.bf16.mxu0 0
    %127 = vmatpush1.bf16.msra.mxu0 %v109
    %128 = vmatprep.subr.bf16.mxu0 0
    %129 = vmatpush1.bf16.msra.mxu0 %v110
    %130 = vmatprep.subr.bf16.mxu0 0
    %131 = vmatpush1.bf16.msra.mxu0 0
    %132 = vmatprep.subr.bf16.mxu0 0
    %133 = vmatpush1.bf16.msra.mxu0 0
    %134 = vmatprep.subr.bf16.mxu0 0
    %135 = vmatpush1.bf16.msra.mxu0 0
    %136 = vmatprep.subr.bf16.mxu0 0
    %137 = vmatpush1.bf16.msra.mxu0 0
    %138 = vmatprep.subr.bf16.mxu0 0
    %139 = vmatpush1.bf16.msra.mxu0 0
    %140 = vmatprep.subr.bf16.mxu0 0
    %141 = vmatpush1.bf16.msra.mxu0 0
    %142 = vmatprep.subr.bf16.mxu0 0
    %143 = vmatpush1.bf16.msra.mxu0 0
    %144 = vmatprep.subr.bf16.mxu0 0
    %145 = vmatpush1.bf16.msra.mxu0 0
    %146 = vmatprep.subr.bf16.mxu0 0
    %147 = vmatpush1.bf16.msra.mxu0 0
    %148 = vmatprep.subr.bf16.mxu0 0
    %149 = vmatpush1.bf16.msra.mxu0 0
    %150 = vmatprep.subr.bf16.mxu0 0
    %151 = vmatpush1.bf16.msra.mxu0 0
    %152 = vmatprep.subr.bf16.mxu0 0
    %153 = vmatpush1.bf16.msra.mxu0 0
    %154 = vmatprep.subr.bf16.mxu0 0
    %155 = vmatpush1.bf16.msra.mxu0 0
    %156 = vmatprep.subr.bf16.mxu0 0
    %157 = vmatpush1.bf16.msra.mxu0 0
    %158 = vmatprep.mubr.bf16.mxu0 0
    %159 = vmatmul.mubr.bf16.gmra.mrb[0].mxu0 %v115
    %v160 = vpop.f32.mrb[0].mxu0
    %v161 = vadd.f32 %v51, %v160
    %v162 = vpop.f32.mrb[0].mxu0
    %v163 = vpop.f32.mrb[0].mxu0
    %v164 = vadd.f32 %v56, %v163
    %v165 = vpop.f32.mrb[0].mxu0
    %166 = vmatprep.mubr.bf16.mxu0 0
    %167 = vmatmul.mubr.bf16.gmra.mrb[0].mxu0 %v118
    %v168 = vpop.f32.mrb[0].mxu0
    %v169 = vadd.f32 %v61, %v168
    %v170 = vpop.f32.mrb[0].mxu0
    %v171 = vpop.f32.mrb[0].mxu0
    %v172 = vadd.f32 %v66, %v171
    %v173 = vpop.f32.mrb[0].mxu0
    %174 = vmatprep.mubr.bf16.mxu0 0
    %175 = vmatmul.mubr.bf16.gmra.mrb[0].mxu0 %v121
    %v176 = vpop.f32.mrb[0].mxu0
    %v177 = vadd.f32 %v71, %v176
    %v178 = vpop.f32.mrb[0].mxu0
    %v179 = vpop.f32.mrb[0].mxu0
    %v180 = vadd.f32 %v76, %v179
    %v181 = vpop.f32.mrb[0].mxu0
    %182 = vmatprep.mubr.bf16.mxu0 0
    %183 = vmatmul.mubr.bf16.gmra.mrb[0].mxu0 %v124
    %v184 = vpop.f32.mrb[0].mxu0
    %v185 = vadd.f32 %v81, %v184
    %v186 = vpop.f32.mrb[0].mxu0
    %v187 = vpop.f32.mrb[0].mxu0
    %v188 = vpop.f32.mrb[0].mxu0
    %189 = vdwg.mxu0
    %v190 = vmax.f32 %v161, 0.0
    %v191 = vmax.f32 %v164, 0.0
    %v192 = vmax.f32 %v169, 0.0
    %v193 = vmax.f32 %v172, 0.0
    %v194 = vmax.f32 %v177, 0.0
    %v195 = vmax.f32 %v180, 0.0
    %v196 = vmax.f32 %v185, 0.0
    %v197 = vld [vmem:[%s3] sm:$0xf]
    %v198 = vld [vmem:[%s3 + $0x4] sm:$0x1]
    %v199 = vpack.c.bf16 %v191, %v190
    %v200 = vpack.c.bf16 %v193, %v192
    %v201 = vpack.c.bf16 %v195, %v194
    %v202 = vpack.c.bf16 %v196, %v196
    %v203 = vld [vmem:[%s4] sm:$0xff]
    %v204 = vld [vmem:[%s4 + $0x8] sm:$0x3]
    %206 = vset.pattern.permute.xlu0 0
    %207 = vperm.xlu0 %206, %v203
    %v208 = vpop.permute.xlu0 %207
    %211 = vset.pattern.permute.xlu0 0
    %212 = vperm.xlu0 %211, %v204
    %v213 = vpop.permute.xlu0 %212
    %v217 = vunpack.c.l.b16 %v197
    %v218 = vunpack.c.l.b16 %v198
    %v219 = vpack.c.b16 %v218, %v217
    %vm220 = vcmask 408576
    %v222 = vsel %vm220, %v219, 0
    %vm224 = vcmask 1040384
    %v226 = vsel %vm224, %v202, 0
    %228 = vmatprep.subr.bf16.mxu0 0
    %229 = vmatpush1.bf16.msra.mxu0 %v199
    %230 = vmatprep.subr.bf16.mxu0 0
    %231 = vmatpush1.bf16.msra.mxu0 %v200
    %232 = vmatprep.subr.bf16.mxu0 0
    %233 = vmatpush1.bf16.msra.mxu0 %v201
    %234 = vmatprep.subr.bf16.mxu0 0
    %235 = vmatpush1.bf16.msra.mxu0 %v226
    %236 = vmatprep.subr.bf16.mxu0 0
    %237 = vmatpush1.bf16.msra.mxu0 0
    %238 = vmatprep.subr.bf16.mxu0 0
    %239 = vmatpush1.bf16.msra.mxu0 0
    %240 = vmatprep.subr.bf16.mxu0 0
    %241 = vmatpush1.bf16.msra.mxu0 0
    %242 = vmatprep.subr.bf16.mxu0 0
    %243 = vmatpush1.bf16.msra.mxu0 0
    %244 = vmatprep.subr.bf16.mxu0 0
    %245 = vmatpush1.bf16.msra.mxu0 0
    %246 = vmatprep.subr.bf16.mxu0 0
    %247 = vmatpush1.bf16.msra.mxu0 0
    %248 = vmatprep.subr.bf16.mxu0 0
    %249 = vmatpush1.bf16.msra.mxu0 0
    %250 = vmatprep.subr.bf16.mxu0 0
    %251 = vmatpush1.bf16.msra.mxu0 0
    %252 = vmatprep.subr.bf16.mxu0 0
    %253 = vmatpush1.bf16.msra.mxu0 0
    %254 = vmatprep.subr.bf16.mxu0 0
    %255 = vmatpush1.bf16.msra.mxu0 0
    %256 = vmatprep.subr.bf16.mxu0 0
    %257 = vmatpush1.bf16.msra.mxu0 0
    %258 = vmatprep.subr.bf16.mxu0 0
    %259 = vmatpush1.bf16.msra.mxu0 0
    %260 = vmatprep.mubr.bf16.mxu0 0
    %261 = vmatmul.mubr.bf16.gmra.mrb[0].mxu0 %v222
    %v262 = vpop.f32.mrb[0].mxu0
    %v263 = vadd.f32 %v208, %v262
    %v264 = vpop.f32.mrb[0].mxu0
    %v265 = vpop.f32.mrb[0].mxu0
    %v266 = vadd.f32 %v213, %v265
    %v267 = vpop.f32.mrb[0].mxu0
    %268 = vdwg.mxu0
    %v269 = vmax.f32 %v263, 0.0
    %v270 = vmax.f32 %v266, 0.0
    %v271 = vld [vmem:[%s5] sm:$0xff]
    %v272 = vld [vmem:[%s5 + $0x8] sm:$0x3]
    %274 = vset.pattern.permute.xlu0 0
    %275 = vperm.xlu0 %274, %v271
    %v276 = vpop.permute.xlu0 %275
    %279 = vset.pattern.permute.xlu0 0
    %280 = vperm.xlu0 %279, %v272
    %v281 = vpop.permute.xlu0 %280
    %v283 = vmul.f32 %v269, %v276
    %v284 = vmul.f32 %v270, %v281
    %vm285 = vcmask 1041408
    %v286 = vsel %vm285, %v284, 0.0
    %v287 = vadd.f32 %v283, %v286
    %v288 = vrot.slane %v287, 4
    %v289 = vadd.f32 %v287, %v288
    %v290 = vrot.slane %v289, 2
    %v291 = vadd.f32 %v289, %v290
    %v292 = vrot.slane %v291, 1
    %v293 = vadd.f32 %v291, %v292
    %v294 = vld [vmem:[#allocation2] sm:$0x1]
    %296 = vset.pattern.permute.xlu0 0
    %297 = vperm.xlu0 %296, %v294
    %v298 = vpop.permute.xlu0 %297
    %v300 = vlaneseq
    %v301 = vshrl.u32 %v300, 7
    %v302 = vsub.s32 0, %v301
    %v303 = vrot.slane %v298, %v302
    %v304 = vadd.f32 %v293, %v303
    %305 = vst [vmem:[#allocation3] sm:$0x1] %v304
    // Predicated region
    $region30: #{tpu_custom_call.1} parent=1 // pred_check
      _
    $region31: #{tpu_custom_call.1} parent=1 // pred_check_branch
      %307 = sbr.rel (0) target = $region33
    $region32: #{tpu_custom_call.1} parent=1 // pred_region
      %s309 = ssub.s32 16, 16
      %310 = vsyncadd [#allocation4], %s309
      %s312 = sshll.u32 [#allocation3], 4
      %s313 = int_to_ptr.vmem [resolvable:$true] %s312
      %315 = dma.vmem_to_hbm [thread:$0]  %s313, 16, %s7, [#allocation4]
    $region33: #{tpu_custom_call.1} parent=1 // pred_fallthru
      _
    // Predicated region
    $region34: #{tpu_custom_call.1} parent=1 // pred_check
      _
    $region35: #{tpu_custom_call.1} parent=1 // pred_check_branch
      %317 = sbr.rel (0) target = $region37
    $region36: #{tpu_custom_call.1} parent=1 // pred_region
      %318 = dma.done [#allocation4], 16
    $region37: #{tpu_custom_call.1} parent=1 // pred_fallthru
      _
    %319 = vsyncpa [#allocation4], 1

</llo_original>
